<compile_context>
chip_gen: v5e
topology: v5e:2x2
jax: 0.10.0
libtpu: 0.0.40
codegen_flags: <defaults>
</compile_context>

<pallas_src>
import jax
import jax.numpy as jnp
from jax.experimental import pallas as pl
from jax.experimental.pallas import tpu as pltpu

# --- module hyperparameters (Environment(10,10) not available -> synthetic) ---
NUM_STATE = 8       # len(env.reset())         -- synthetic small value
NUM_ACTION = 4      # len(env.action_space())  -- synthetic small value
HIDDEN = 100        # fixed by the module: nn.Linear(num_state, 100)
HIDDEN_PAD = 128    # zero-padded hidden width: full 128-lane vreg / MXU tile

LANE = 128          # TPU lane width; batch tile must be a multiple of this
TB_MAX = 2048       # max batch tile (lanes); hidden tile 128x2048 f32 = 1 MiB

_HI = jax.lax.Precision.HIGHEST   # exact f32 matmuls in kernel AND reference


def _round_up(n, m):
    return ((n + m - 1) // m) * m


def _actor_kernel(xt_ref, w1_ref, b1_ref, w2_ref, b2_ref, out_ref):
    # Batch-on-lanes layout; one TB-wide batch tile per grid step.
    xt = xt_ref[...]                                               # [S, TB]
    h = jnp.dot(w1_ref[...], xt, preferred_element_type=jnp.float32,
                precision=_HI) + b1_ref[...]                       # [128, TB]
    h = jnp.maximum(h, 0.0)                                        # ReLU
    logits = jnp.dot(w2_ref[...], h, preferred_element_type=jnp.float32,
                     precision=_HI) + b2_ref[...]                  # [A, TB]
    # numerically-stable softmax over the action axis (4 sublanes, VPU reduce)
    m = jnp.max(logits, axis=0, keepdims=True)                     # [1, TB]
    e = jnp.exp(logits - m)
    denom = jnp.sum(e, axis=0, keepdims=True)                      # [1, TB]
    out_ref[...] = e / denom                                       # exact divide


def prepare_params(w1, b1, w2, b2):
    """One-time layout prep (call once after init / load, cache the result).

    PyTorch Linear layout in:  w1 [H, S], b1 [H], w2 [A, H], b2 [A]
    Kernel layout out:         w1p [128, S], b1p [128, 1], w2p [A, 128], b2p [A, 1]
    HIDDEN is zero-padded 100 -> 128 (exact: padded hidden units are identically 0).
    """
    w1p = jnp.zeros((HIDDEN_PAD, NUM_STATE), jnp.float32).at[:HIDDEN, :].set(
        w1.astype(jnp.float32))
    b1p = jnp.zeros((HIDDEN_PAD, 1), jnp.float32).at[:HIDDEN, 0].set(
        b1.astype(jnp.float32))
    w2p = jnp.zeros((NUM_ACTION, HIDDEN_PAD), jnp.float32).at[:, :HIDDEN].set(
        w2.astype(jnp.float32))
    b2p = b2.reshape(NUM_ACTION, 1).astype(jnp.float32)
    return w1p, b1p, w2p, b2p


def _choose_tiling(B):
    """Pick (n_tiles, TB) with TB a multiple of 128, minimal pad waste, and
    >=2 tiles for mid/large batches so v7x can shard across both TCs."""
    B = max(int(B), 1)
    n_tiles = pl.cdiv(B, TB_MAX)
    if B >= 2 * LANE:
        n_tiles = max(n_tiles, 2)
    n_tiles = max(n_tiles, 1)
    tb = _round_up(pl.cdiv(B, n_tiles), LANE)
    return n_tiles, tb


def _forward_impl(x, w1p, b1p, w2p, b2p):
    B = x.shape[0]
    n_tiles, tb = _choose_tiling(B)
    Bp = n_tiles * tb

    # Batch-on-lanes: feed x^T so the x DMA and the output store are lane-dense.
    xt = jnp.transpose(x)                                          # [S, B]
    if xt.dtype != jnp.float32:
        xt = xt.astype(jnp.float32)
    if Bp != B:
        xt = jnp.pad(xt, ((0, 0), (0, Bp - B)))

    out_t = pl.pallas_call(
        _actor_kernel,
        out_shape=jax.ShapeDtypeStruct((NUM_ACTION, Bp), jnp.float32),
        grid=(n_tiles,),
        in_specs=[
            # batch-tiled activations (lane axis = batch)
            pl.BlockSpec((NUM_STATE, tb), lambda i: (0, i)),
            # weights / biases stay VMEM-resident across grid iterations
            pl.BlockSpec((HIDDEN_PAD, NUM_STATE), lambda i: (0, 0)),
            pl.BlockSpec((HIDDEN_PAD, 1), lambda i: (0, 0)),
            pl.BlockSpec((NUM_ACTION, HIDDEN_PAD), lambda i: (0, 0)),
            pl.BlockSpec((NUM_ACTION, 1), lambda i: (0, 0)),
        ],
        out_specs=pl.BlockSpec((NUM_ACTION, tb), lambda i: (0, i)),
        compiler_params=pltpu.CompilerParams(
            dimension_semantics=("parallel",)),
    )(xt, w1p, b1p, w2p, b2p)

    # [A, Bp] -> [B, A]; transposing the tiny 4-row result is cheap wrapper glue.
    return jnp.transpose(out_t[:, :B])


# jit so the (cheap) transpose / pad / slice glue fuses with dispatch.
actor_forward = jax.jit(_forward_impl)


def init_params(key):
    # Deterministic synthetic init (uniform, like PyTorch's default Linear init).
    k1, k2, k3, k4 = jax.random.split(key, 4)
    bound1 = 1.0 / (NUM_STATE ** 0.5)
    bound2 = 1.0 / (HIDDEN ** 0.5)
    w1 = jax.random.uniform(k1, (HIDDEN, NUM_STATE), jnp.float32, -bound1, bound1)
    b1 = jax.random.uniform(k2, (HIDDEN,), jnp.float32, -bound1, bound1)
    w2 = jax.random.uniform(k3, (NUM_ACTION, HIDDEN), jnp.float32, -bound2, bound2)
    b2 = jax.random.uniform(k4, (NUM_ACTION,), jnp.float32, -bound2, bound2)
    return w1, b1, w2, b2


def _reference(x, w1, b1, w2, b2):
    # Exact-f32 reference (same precision as the kernel).
    h = jnp.maximum(jnp.dot(x, w1.T, precision=_HI) + b1, 0.0)
    logits = jnp.dot(h, w2.T, precision=_HI) + b2
    return jax.nn.softmax(logits, axis=1)


if __name__ == "__main__":
    key = jax.random.PRNGKey(0)
    kx, kp, kb = jax.random.split(key, 3)
    w1, b1, w2, b2 = init_params(kp)
    # One-time layout prep (hoisted out of the per-step forward path).
    w1p, b1p, w2p, b2p = prepare_params(w1, b1, w2, b2)

    # --- small case matching the spec (batch=2) ---
    batch = 2
    x = jax.random.normal(kx, (batch, NUM_STATE), jnp.float32)
    action_prob = actor_forward(x, w1p, b1p, w2p, b2p)
    jax.block_until_ready(action_prob)

    ref = _reference(x, w1, b1, w2, b2)
    assert action_prob.shape == (batch, NUM_ACTION)
    assert jnp.allclose(action_prob, ref, atol=1e-3, rtol=1e-3)
    assert jnp.allclose(jnp.sum(action_prob, axis=1), 1.0, atol=1e-3)

    # --- larger batch to exercise the multi-tile grid + ragged padding path ---
    big_batch = 1030  # deliberately not a multiple of the lane-width tile
    xb = jax.random.normal(kb, (big_batch, NUM_STATE), jnp.float32)
    big_prob = actor_forward(xb, w1p, b1p, w2p, b2p)
    jax.block_until_ready(big_prob)
    big_ref = _reference(xb, w1, b1, w2, b2)
    assert big_prob.shape == (big_batch, NUM_ACTION)
    assert jnp.allclose(big_prob, big_ref, atol=1e-3, rtol=1e-3)
    assert jnp.allclose(jnp.sum(big_prob, axis=1), 1.0, atol=1e-3)

    print("KERNEL_OK")
</pallas_src>

<mosaic_0001>
module attributes {stable_mosaic.version = 11 : i64} {
  func.func @_actor_kernel(%arg0: i32, %arg1: memref<8x128xf32, #tpu.memory_space<vmem>>, %arg2: memref<128x8xf32, #tpu.memory_space<vmem>>, %arg3: memref<128x1xf32, #tpu.memory_space<vmem>>, %arg4: memref<4x128xf32, #tpu.memory_space<vmem>>, %arg5: memref<4x1xf32, #tpu.memory_space<vmem>>, %arg6: memref<4x128xf32, #tpu.memory_space<vmem>>) attributes {dimension_semantics = [#tpu.dimension_semantics<parallel>], iteration_bounds = array<i64: 1>, scalar_prefetch = 0 : i64, scratch_operands = 0 : i64, tpu.core_type = #tpu.core_type<tc>, window_params = [{transform_indices = @transform_0, window_bounds = array<i64: 8, 128>}, {pipeline_mode = #tpu.pipeline_mode<synchronous>, transform_indices = @transform_1, window_bounds = array<i64: 128, 8>}, {pipeline_mode = #tpu.pipeline_mode<synchronous>, transform_indices = @transform_2, window_bounds = array<i64: 128, 1>}, {pipeline_mode = #tpu.pipeline_mode<synchronous>, transform_indices = @transform_3, window_bounds = array<i64: 4, 128>}, {pipeline_mode = #tpu.pipeline_mode<synchronous>, transform_indices = @transform_4, window_bounds = array<i64: 4, 1>}, {transform_indices = @transform_5, window_bounds = array<i64: 4, 128>}]} {
    %c0 = arith.constant 0 : index
    %c0_0 = arith.constant 0 : index
    %0 = vector.load %arg1[%c0, %c0_0] : memref<8x128xf32, #tpu.memory_space<vmem>>, vector<8x128xf32>
    %c0_1 = arith.constant 0 : index
    %c0_2 = arith.constant 0 : index
    %1 = vector.load %arg2[%c0_1, %c0_2] : memref<128x8xf32, #tpu.memory_space<vmem>>, vector<128x8xf32>
    %cst = arith.constant dense<0.000000e+00> : vector<128x128xf32>
    %2 = tpu.matmul %1, %0, %cst {dimension_numbers = #tpu.dot_dimension_numbers<[1], [0], [0], [1], [0, 0, 1, 1], [], []>, precision = #tpu.contract_precision<fp32>} : vector<128x8xf32>, vector<8x128xf32>, vector<128x128xf32> -> vector<128x128xf32>
    %c0_3 = arith.constant 0 : index
    %c0_4 = arith.constant 0 : index
    %3 = vector.load %arg3[%c0_3, %c0_4] : memref<128x1xf32, #tpu.memory_space<vmem>>, vector<128x1xf32>
    %4 = vector.broadcast %3 : vector<128x1xf32> to vector<128x128xf32>
    %5 = arith.addf %2, %4 : vector<128x128xf32>
    %cst_5 = arith.constant 0.000000e+00 : f32
    %6 = vector.broadcast %cst_5 : f32 to vector<128x128xf32>
    %7 = arith.maximumf %5, %6 : vector<128x128xf32>
    %c0_6 = arith.constant 0 : index
    %c0_7 = arith.constant 0 : index
    %8 = vector.load %arg4[%c0_6, %c0_7] : memref<4x128xf32, #tpu.memory_space<vmem>>, vector<4x128xf32>
    %cst_8 = arith.constant dense<0.000000e+00> : vector<4x128xf32>
    %9 = tpu.matmul %8, %7, %cst_8 {dimension_numbers = #tpu.dot_dimension_numbers<[1], [0], [0], [1], [0, 0, 1, 1], [], []>, precision = #tpu.contract_precision<fp32>} : vector<4x128xf32>, vector<128x128xf32>, vector<4x128xf32> -> vector<4x128xf32>
    %c0_9 = arith.constant 0 : index
    %c0_10 = arith.constant 0 : index
    %10 = vector.load %arg5[%c0_9, %c0_10] : memref<4x1xf32, #tpu.memory_space<vmem>>, vector<4x1xf32>
    %11 = vector.broadcast %10 : vector<4x1xf32> to vector<4x128xf32>
    %12 = arith.addf %9, %11 : vector<4x128xf32>
    %cst_11 = arith.constant dense<0xFF800000> : vector<128xf32>
    %13 = vector.multi_reduction <maximumf>, %12, %cst_11 [0] : vector<4x128xf32> to vector<128xf32>
    %14 = vector.shape_cast %13 : vector<128xf32> to vector<1x128xf32>
    %15 = vector.broadcast %14 : vector<1x128xf32> to vector<4x128xf32>
    %16 = arith.subf %12, %15 : vector<4x128xf32>
    %17 = math.exp %16 : vector<4x128xf32>
    %cst_12 = arith.constant dense<0.000000e+00> : vector<128xf32>
    %18 = vector.multi_reduction <add>, %17, %cst_12 [0] : vector<4x128xf32> to vector<128xf32>
    %19 = vector.shape_cast %18 : vector<128xf32> to vector<1x128xf32>
    %20 = vector.broadcast %19 : vector<1x128xf32> to vector<4x128xf32>
    %21 = arith.divf %17, %20 : vector<4x128xf32>
    %c0_13 = arith.constant 0 : index
    %c0_14 = arith.constant 0 : index
    %22 = vector.load %arg6[%c0_13, %c0_14] : memref<4x128xf32, #tpu.memory_space<vmem>>, vector<4x128xf32>
    tpu.vector_store %arg6[%c0_13, %c0_14], %21 {strides = array<i32>} : memref<4x128xf32, #tpu.memory_space<vmem>>, vector<4x128xf32>,
    return
  }
  func.func @transform_0(%arg0: i32) -> (i32, i32) {
    %c0_i32 = arith.constant 0 : i32
    %c0_i32_0 = arith.constant 0 : i32
    return %c0_i32, %arg0 : i32, i32
  }
  func.func @transform_1(%arg0: i32) -> (i32, i32) {
    %c0_i32 = arith.constant 0 : i32
    %c0_i32_0 = arith.constant 0 : i32
    %c0_i32_1 = arith.constant 0 : i32
    return %c0_i32, %c0_i32_0 : i32, i32
  }
  func.func @transform_2(%arg0: i32) -> (i32, i32) {
    %c0_i32 = arith.constant 0 : i32
    %c0_i32_0 = arith.constant 0 : i32
    %c0_i32_1 = arith.constant 0 : i32
    return %c0_i32, %c0_i32_0 : i32, i32
  }
  func.func @transform_3(%arg0: i32) -> (i32, i32) {
    %c0_i32 = arith.constant 0 : i32
    %c0_i32_0 = arith.constant 0 : i32
    %c0_i32_1 = arith.constant 0 : i32
    return %c0_i32, %c0_i32_0 : i32, i32
  }
  func.func @transform_4(%arg0: i32) -> (i32, i32) {
    %c0_i32 = arith.constant 0 : i32
    %c0_i32_0 = arith.constant 0 : i32
    %c0_i32_1 = arith.constant 0 : i32
    return %c0_i32, %c0_i32_0 : i32, i32
  }
  func.func @transform_5(%arg0: i32) -> (i32, i32) {
    %c0_i32 = arith.constant 0 : i32
    %c0_i32_0 = arith.constant 0 : i32
    return %c0_i32, %arg0 : i32, i32
  }
}

</mosaic_0001>

<llo_original>
// kernel: _forward_impl.1
$region0: #{_forward_impl.1}
  #allocation0 [shape = 'u32[]', space=smem, size = 0x4, offset = 0x4, fixed_abs, tag = 'smem constant byte address 0x4 - core index']
  #allocation1 [shape = 'u32[72,128]{1,0:T(1,128)}', space=vmem, size = 0x9000, scoped, tag = 'internal scratch']
  %s0 = inlined_call_operand.vmem [shape: f32[8,128], index: 0, kind: input, shape index: {}]
  %s1 = inlined_call_operand.vmem [shape: f32[128,8], index: 1, kind: input, shape index: {}]
  %s2 = inlined_call_operand.vmem [shape: f32[128,1], index: 2, kind: input, shape index: {}]
  %s3 = inlined_call_operand.vmem [shape: f32[4,128], index: 3, kind: input, shape index: {}]
  %s4 = inlined_call_operand.vmem [shape: f32[4,1], index: 4, kind: input, shape index: {}]
  %s5 = inlined_call_operand.vmem [shape: f32[4,128], index: 5, kind: output, shape index: {}]
  %s6 = sld [smem:[#allocation0]]
  $region30: #{_forward_impl.1} parent=0
    _
  %s8 = ssub.s32 1, %s6
  %s9 = scalar_select 0, %s8, %s6
  // Predicated region
  $region2: #{_forward_impl.1} parent=0 // pred_check
    _
  $region3: #{_forward_impl.1} parent=0 // pred_check_branch
    %11 = sbr.rel (0) target = $region5
  $region4: #{_forward_impl.1} parent=0 // pred_region
    _
  $region5: #{_forward_impl.1} parent=0 // pred_fallthru
    _
  // Predicated region
  $region6: #{_forward_impl.1} parent=0 // pred_check
    _
  $region7: #{_forward_impl.1} parent=0 // pred_check_branch
    %13 = sbr.rel (0) target = $region9
  $region8: #{_forward_impl.1} parent=0 // pred_region
    _
  $region9: #{_forward_impl.1} parent=0 // pred_fallthru
    _
  // Predicated region
  $region10: #{_forward_impl.1} parent=0 // pred_check
    _
  $region11: #{_forward_impl.1} parent=0 // pred_check_branch
    %15 = sbr.rel (0) target = $region13
  $region12: #{_forward_impl.1} parent=0 // pred_region
    _
  $region13: #{_forward_impl.1} parent=0 // pred_fallthru
    _
  // Predicated region
  $region14: #{_forward_impl.1} parent=0 // pred_check
    _
  $region15: #{_forward_impl.1} parent=0 // pred_check_branch
    %17 = sbr.rel (0) target = $region17
  $region16: #{_forward_impl.1} parent=0 // pred_region
    _
  $region17: #{_forward_impl.1} parent=0 // pred_fallthru
    _
  // Predicated region
  $region18: #{_forward_impl.1} parent=0 // pred_check
    _
  $region19: #{_forward_impl.1} parent=0 // pred_check_branch
    %19 = sbr.rel (0) target = $region21
  $region20: #{_forward_impl.1} parent=0 // pred_region
    _
  $region21: #{_forward_impl.1} parent=0 // pred_fallthru
    _
  %v20 = vld [vmem:[%s0] sm:$0xff]
  %v21 = vld [vmem:[%s1] sm:$0xff]
  %v22 = vld [vmem:[%s1 + $0x8] sm:$0xff]
  %v23 = vld [vmem:[%s1 + $0x10] sm:$0xff]
  %v24 = vld [vmem:[%s1 + $0x18] sm:$0xff]
  %v25 = vld [vmem:[%s1 + $0x20] sm:$0xff]
  %v26 = vld [vmem:[%s1 + $0x28] sm:$0xff]
  %v27 = vld [vmem:[%s1 + $0x30] sm:$0xff]
  %v28 = vld [vmem:[%s1 + $0x38] sm:$0xff]
  %v29 = vld [vmem:[%s1 + $0x40] sm:$0xff]
  %v30 = vld [vmem:[%s1 + $0x48] sm:$0xff]
  %v31 = vld [vmem:[%s1 + $0x50] sm:$0xff]
  %v32 = vld [vmem:[%s1 + $0x58] sm:$0xff]
  %v33 = vld [vmem:[%s1 + $0x60] sm:$0xff]
  %v34 = vld [vmem:[%s1 + $0x68] sm:$0xff]
  %v35 = vld [vmem:[%s1 + $0x70] sm:$0xff]
  %v36 = vld [vmem:[%s1 + $0x78] sm:$0xff]
  %v37 = vld [vmem:[%s2] sm:$0xff]
  %v38 = vld [vmem:[%s2 + $0x8] sm:$0xff]
  %v39 = vld [vmem:[%s2 + $0x10] sm:$0xff]
  %v40 = vld [vmem:[%s2 + $0x18] sm:$0xff]
  %v41 = vld [vmem:[%s2 + $0x20] sm:$0xff]
  %v42 = vld [vmem:[%s2 + $0x28] sm:$0xff]
  %v43 = vld [vmem:[%s2 + $0x30] sm:$0xff]
  %v44 = vld [vmem:[%s2 + $0x38] sm:$0xff]
  %v45 = vld [vmem:[%s2 + $0x40] sm:$0xff]
  %v46 = vld [vmem:[%s2 + $0x48] sm:$0xff]
  %v47 = vld [vmem:[%s2 + $0x50] sm:$0xff]
  %v48 = vld [vmem:[%s2 + $0x58] sm:$0xff]
  %v49 = vld [vmem:[%s2 + $0x60] sm:$0xff]
  %v50 = vld [vmem:[%s2 + $0x68] sm:$0xff]
  %v51 = vld [vmem:[%s2 + $0x70] sm:$0xff]
  %v52 = vld [vmem:[%s2 + $0x78] sm:$0xff]
  %54 = vset.pattern.permute.xlu0 0
  %55 = vperm.xlu0 %54, %v37
  %v56 = vpop.permute.xlu0 %55
  %59 = vset.pattern.permute.xlu0 0
  %60 = vperm.xlu0 %59, %v38
  %v61 = vpop.permute.xlu0 %60
  %64 = vset.pattern.permute.xlu0 0
  %65 = vperm.xlu0 %64, %v39
  %v66 = vpop.permute.xlu0 %65
  %69 = vset.pattern.permute.xlu0 0
  %70 = vperm.xlu0 %69, %v40
  %v71 = vpop.permute.xlu0 %70
  %74 = vset.pattern.permute.xlu0 0
  %75 = vperm.xlu0 %74, %v41
  %v76 = vpop.permute.xlu0 %75
  %79 = vset.pattern.permute.xlu0 0
  %80 = vperm.xlu0 %79, %v42
  %v81 = vpop.permute.xlu0 %80
  %84 = vset.pattern.permute.xlu0 0
  %85 = vperm.xlu0 %84, %v43
  %v86 = vpop.permute.xlu0 %85
  %89 = vset.pattern.permute.xlu0 0
  %90 = vperm.xlu0 %89, %v44
  %v91 = vpop.permute.xlu0 %90
  %94 = vset.pattern.permute.xlu0 0
  %95 = vperm.xlu0 %94, %v45
  %v96 = vpop.permute.xlu0 %95
  %99 = vset.pattern.permute.xlu0 0
  %100 = vperm.xlu0 %99, %v46
  %v101 = vpop.permute.xlu0 %100
  %104 = vset.pattern.permute.xlu0 0
  %105 = vperm.xlu0 %104, %v47
  %v106 = vpop.permute.xlu0 %105
  %109 = vset.pattern.permute.xlu0 0
  %110 = vperm.xlu0 %109, %v48
  %v111 = vpop.permute.xlu0 %110
  %114 = vset.pattern.permute.xlu0 0
  %115 = vperm.xlu0 %114, %v49
  %v116 = vpop.permute.xlu0 %115
  %119 = vset.pattern.permute.xlu0 0
  %120 = vperm.xlu0 %119, %v50
  %v121 = vpop.permute.xlu0 %120
  %124 = vset.pattern.permute.xlu0 0
  %125 = vperm.xlu0 %124, %v51
  %v126 = vpop.permute.xlu0 %125
  %129 = vset.pattern.permute.xlu0 0
  %130 = vperm.xlu0 %129, %v52
  %v131 = vpop.permute.xlu0 %130
  %vm133 = vcmask 64512
  %v135 = vsel %vm133, %v21, 0
  %v138 = vsel %vm133, %v22, 0
  %v141 = vsel %vm133, %v23, 0
  %v144 = vsel %vm133, %v24, 0
  %v147 = vsel %vm133, %v25, 0
  %v150 = vsel %vm133, %v26, 0
  %v153 = vsel %vm133, %v27, 0
  %v156 = vsel %vm133, %v28, 0
  %v159 = vsel %vm133, %v29, 0
  %v162 = vsel %vm133, %v30, 0
  %v165 = vsel %vm133, %v31, 0
  %v168 = vsel %vm133, %v32, 0
  %v171 = vsel %vm133, %v33, 0
  %v174 = vsel %vm133, %v34, 0
  %v177 = vsel %vm133, %v35, 0
  %v180 = vsel %vm133, %v36, 0
  %182 = vmatpush.msra.mxu0 0.0
  %183 = vmatpush.msra.mxu0 0.0
  %184 = vmatpush.msra.mxu0 0.0
  %185 = vmatpush.msra.mxu0 0.0
  %186 = vmatpush.msra.mxu0 0.0
  %187 = vmatpush.msra.mxu0 0.0
  %188 = vmatpush.msra.mxu0 0.0
  %189 = vmatpush.msra.mxu0 0.0
  %190 = vmatpush.msra.mxu0 0.0
  %191 = vmatpush.msra.mxu0 0.0
  %192 = vmatpush.msra.mxu0 0.0
  %193 = vmatpush.msra.mxu0 0.0
  %194 = vmatpush.msra.mxu0 0.0
  %195 = vmatpush.msra.mxu0 0.0
  %196 = vmatpush.msra.mxu0 0.0
  %v197 = vand.u32 %v20, 4294901760
  %198 = vmatpush.msra.mxu0 %v197
  %v199 = vand.u32 %v135, 4294901760
  %v200 = vsub.f32 %v135, %v199
  %v201 = vand.u32 %v200, 4294901760
  %v202 = vsub.f32 %v200, %v201
  %v203 = vand.u32 %v202, 4294901760
  %204 = vmatmul.f32.gmra.mxu0 %v203
  %v205 = vpop.f32.mrf.mxu0
  %v206 = vadd.f32 %v56, %v205
  %v207 = vand.u32 %v138, 4294901760
  %v208 = vsub.f32 %v138, %v207
  %v209 = vand.u32 %v208, 4294901760
  %v210 = vsub.f32 %v208, %v209
  %v211 = vand.u32 %v210, 4294901760
  %212 = vmatmul.f32.gmra.mxu0 %v211
  %v213 = vpop.f32.mrf.mxu0
  %v214 = vadd.f32 %v61, %v213
  %v215 = vand.u32 %v141, 4294901760
  %v216 = vsub.f32 %v141, %v215
  %v217 = vand.u32 %v216, 4294901760
  %v218 = vsub.f32 %v216, %v217
  %v219 = vand.u32 %v218, 4294901760
  %220 = vmatmul.f32.gmra.mxu0 %v219
  %v221 = vpop.f32.mrf.mxu0
  %v222 = vadd.f32 %v66, %v221
  %v223 = vand.u32 %v144, 4294901760
  %v224 = vsub.f32 %v144, %v223
  %v225 = vand.u32 %v224, 4294901760
  %v226 = vsub.f32 %v224, %v225
  %v227 = vand.u32 %v226, 4294901760
  %228 = vmatmul.f32.gmra.mxu0 %v227
  %v229 = vpop.f32.mrf.mxu0
  %v230 = vadd.f32 %v71, %v229
  %v231 = vand.u32 %v147, 4294901760
  %v232 = vsub.f32 %v147, %v231
  %v233 = vand.u32 %v232, 4294901760
  %v234 = vsub.f32 %v232, %v233
  %v235 = vand.u32 %v234, 4294901760
  %236 = vmatmul.f32.gmra.mxu0 %v235
  %v237 = vpop.f32.mrf.mxu0
  %v238 = vadd.f32 %v76, %v237
  %v239 = vand.u32 %v150, 4294901760
  %v240 = vsub.f32 %v150, %v239
  %v241 = vand.u32 %v240, 4294901760
  %v242 = vsub.f32 %v240, %v241
  %v243 = vand.u32 %v242, 4294901760
  %244 = vmatmul.f32.gmra.mxu0 %v243
  %v245 = vpop.f32.mrf.mxu0
  %v246 = vadd.f32 %v81, %v245
  %v247 = vand.u32 %v153, 4294901760
  %v248 = vsub.f32 %v153, %v247
  %v249 = vand.u32 %v248, 4294901760
  %v250 = vsub.f32 %v248, %v249
  %v251 = vand.u32 %v250, 4294901760
  %252 = vmatmul.f32.gmra.mxu0 %v251
  %v253 = vpop.f32.mrf.mxu0
  %v254 = vadd.f32 %v86, %v253
  %v255 = vand.u32 %v156, 4294901760
  %v256 = vsub.f32 %v156, %v255
  %v257 = vand.u32 %v256, 4294901760
  %v258 = vsub.f32 %v256, %v257
  %v259 = vand.u32 %v258, 4294901760
  %260 = vmatmul.f32.gmra.mxu0 %v259
  %v261 = vpop.f32.mrf.mxu0
  %v262 = vadd.f32 %v91, %v261
  %v263 = vand.u32 %v159, 4294901760
  %v264 = vsub.f32 %v159, %v263
  %v265 = vand.u32 %v264, 4294901760
  %v266 = vsub.f32 %v264, %v265
  %v267 = vand.u32 %v266, 4294901760
  %268 = vmatmul.f32.gmra.mxu0 %v267
  %v269 = vpop.f32.mrf.mxu0
  %v270 = vadd.f32 %v96, %v269
  %v271 = vand.u32 %v162, 4294901760
  %v272 = vsub.f32 %v162, %v271
  %v273 = vand.u32 %v272, 4294901760
  %v274 = vsub.f32 %v272, %v273
  %v275 = vand.u32 %v274, 4294901760
  %276 = vmatmul.f32.gmra.mxu0 %v275
  %v277 = vpop.f32.mrf.mxu0
  %v278 = vadd.f32 %v101, %v277
  %v279 = vand.u32 %v165, 4294901760
  %v280 = vsub.f32 %v165, %v279
  %v281 = vand.u32 %v280, 4294901760
  %v282 = vsub.f32 %v280, %v281
  %v283 = vand.u32 %v282, 4294901760
  %284 = vmatmul.f32.gmra.mxu0 %v283
  %v285 = vpop.f32.mrf.mxu0
  %v286 = vadd.f32 %v106, %v285
  %v287 = vand.u32 %v168, 4294901760
  %v288 = vsub.f32 %v168, %v287
  %v289 = vand.u32 %v288, 4294901760
  %v290 = vsub.f32 %v288, %v289
  %v291 = vand.u32 %v290, 4294901760
  %292 = vmatmul.f32.gmra.mxu0 %v291
  %v293 = vpop.f32.mrf.mxu0
  %v294 = vadd.f32 %v111, %v293
  %v295 = vand.u32 %v171, 4294901760
  %v296 = vsub.f32 %v171, %v295
  %v297 = vand.u32 %v296, 4294901760
  %v298 = vsub.f32 %v296, %v297
  %v299 = vand.u32 %v298, 4294901760
  %300 = vmatmul.f32.gmra.mxu0 %v299
  %v301 = vpop.f32.mrf.mxu0
  %v302 = vadd.f32 %v116, %v301
  %v303 = vand.u32 %v174, 4294901760
  %v304 = vsub.f32 %v174, %v303
  %v305 = vand.u32 %v304, 4294901760
  %v306 = vsub.f32 %v304, %v305
  %v307 = vand.u32 %v306, 4294901760
  %308 = vmatmul.f32.gmra.mxu0 %v307
  %v309 = vpop.f32.mrf.mxu0
  %v310 = vadd.f32 %v121, %v309
  %v311 = vand.u32 %v177, 4294901760
  %v312 = vsub.f32 %v177, %v311
  %v313 = vand.u32 %v312, 4294901760
  %v314 = vsub.f32 %v312, %v313
  %v315 = vand.u32 %v314, 4294901760
  %316 = vmatmul.f32.gmra.mxu0 %v315
  %v317 = vpop.f32.mrf.mxu0
  %v318 = vadd.f32 %v126, %v317
  %v319 = vand.u32 %v180, 4294901760
  %v320 = vsub.f32 %v180, %v319
  %v321 = vand.u32 %v320, 4294901760
  %v322 = vsub.f32 %v320, %v321
  %v323 = vand.u32 %v322, 4294901760
  %324 = vmatmul.f32.gmra.mxu0 %v323
  %v325 = vpop.f32.mrf.mxu0
  %v326 = vadd.f32 %v131, %v325
  %327 = vdwg.mxu0
  %328 = vmatpush.msra.mxu0 0.0
  %329 = vmatpush.msra.mxu0 0.0
  %330 = vmatpush.msra.mxu0 0.0
  %331 = vmatpush.msra.mxu0 0.0
  %332 = vmatpush.msra.mxu0 0.0
  %333 = vmatpush.msra.mxu0 0.0
  %334 = vmatpush.msra.mxu0 0.0
  %335 = vmatpush.msra.mxu0 0.0
  %336 = vmatpush.msra.mxu0 0.0
  %337 = vmatpush.msra.mxu0 0.0
  %338 = vmatpush.msra.mxu0 0.0
  %339 = vmatpush.msra.mxu0 0.0
  %340 = vmatpush.msra.mxu0 0.0
  %341 = vmatpush.msra.mxu0 0.0
  %342 = vmatpush.msra.mxu0 0.0
  %v343 = vand.u32 %v20, 4294901760
  %v344 = vsub.f32 %v20, %v343
  %v345 = vand.u32 %v344, 4294901760
  %v346 = vsub.f32 %v344, %v345
  %v347 = vand.u32 %v346, 4294901760
  %348 = vmatpush.msra.mxu0 %v347
  %v349 = vand.u32 %v135, 4294901760
  %350 = vmatmul.f32.gmra.mxu0 %v349
  %v351 = vpop.f32.mrf.mxu0
  %v352 = vadd.f32 %v206, %v351
  %v353 = vand.u32 %v138, 4294901760
  %354 = vmatmul.f32.gmra.mxu0 %v353
  %v355 = vpop.f32.mrf.mxu0
  %v356 = vadd.f32 %v214, %v355
  %v357 = vand.u32 %v141, 4294901760
  %358 = vmatmul.f32.gmra.mxu0 %v357
  %v359 = vpop.f32.mrf.mxu0
  %v360 = vadd.f32 %v222, %v359
  %v361 = vand.u32 %v144, 4294901760
  %362 = vmatmul.f32.gmra.mxu0 %v361
  %v363 = vpop.f32.mrf.mxu0
  %v364 = vadd.f32 %v230, %v363
  %v365 = vand.u32 %v147, 4294901760
  %366 = vmatmul.f32.gmra.mxu0 %v365
  %v367 = vpop.f32.mrf.mxu0
  %v368 = vadd.f32 %v238, %v367
  %v369 = vand.u32 %v150, 4294901760
  %370 = vmatmul.f32.gmra.mxu0 %v369
  %v371 = vpop.f32.mrf.mxu0
  %v372 = vadd.f32 %v246, %v371
  %v373 = vand.u32 %v153, 4294901760
  %374 = vmatmul.f32.gmra.mxu0 %v373
  %v375 = vpop.f32.mrf.mxu0
  %v376 = vadd.f32 %v254, %v375
  %v377 = vand.u32 %v156, 4294901760
  %378 = vmatmul.f32.gmra.mxu0 %v377
  %v379 = vpop.f32.mrf.mxu0
  %v380 = vadd.f32 %v262, %v379
  %v381 = vand.u32 %v159, 4294901760
  %382 = vmatmul.f32.gmra.mxu0 %v381
  %v383 = vpop.f32.mrf.mxu0
  %v384 = vadd.f32 %v270, %v383
  %v385 = vand.u32 %v162, 4294901760
  %386 = vmatmul.f32.gmra.mxu0 %v385
  %v387 = vpop.f32.mrf.mxu0
  %v388 = vadd.f32 %v278, %v387
  %v389 = vand.u32 %v165, 4294901760
  %390 = vmatmul.f32.gmra.mxu0 %v389
  %v391 = vpop.f32.mrf.mxu0
  %v392 = vadd.f32 %v286, %v391
  %v393 = vand.u32 %v168, 4294901760
  %394 = vmatmul.f32.gmra.mxu0 %v393
  %v395 = vpop.f32.mrf.mxu0
  %v396 = vadd.f32 %v294, %v395
  %v397 = vand.u32 %v171, 4294901760
  %398 = vmatmul.f32.gmra.mxu0 %v397
  %v399 = vpop.f32.mrf.mxu0
  %v400 = vadd.f32 %v302, %v399
  %v401 = vand.u32 %v174, 4294901760
  %402 = vmatmul.f32.gmra.mxu0 %v401
  %v403 = vpop.f32.mrf.mxu0
  %v404 = vadd.f32 %v310, %v403
  %v405 = vand.u32 %v177, 4294901760
  %406 = vmatmul.f32.gmra.mxu0 %v405
  %v407 = vpop.f32.mrf.mxu0
  %v408 = vadd.f32 %v318, %v407
  %v409 = vand.u32 %v180, 4294901760
  %410 = vmatmul.f32.gmra.mxu0 %v409
  %v411 = vpop.f32.mrf.mxu0
  %v412 = vadd.f32 %v326, %v411
  %413 = vdwg.mxu0
  %414 = vmatpush.msra.mxu0 0.0
  %415 = vmatpush.msra.mxu0 0.0
  %416 = vmatpush.msra.mxu0 0.0
  %417 = vmatpush.msra.mxu0 0.0
  %418 = vmatpush.msra.mxu0 0.0
  %419 = vmatpush.msra.mxu0 0.0
  %420 = vmatpush.msra.mxu0 0.0
  %421 = vmatpush.msra.mxu0 0.0
  %422 = vmatpush.msra.mxu0 0.0
  %423 = vmatpush.msra.mxu0 0.0
  %424 = vmatpush.msra.mxu0 0.0
  %425 = vmatpush.msra.mxu0 0.0
  %426 = vmatpush.msra.mxu0 0.0
  %427 = vmatpush.msra.mxu0 0.0
  %428 = vmatpush.msra.mxu0 0.0
  %v429 = vand.u32 %v20, 4294901760
  %v430 = vsub.f32 %v20, %v429
  %431 = vmatpush.msra.mxu0 %v430
  %v432 = vand.u32 %v135, 4294901760
  %v433 = vsub.f32 %v135, %v432
  %434 = vmatmul.f32.gmra.mxu0 %v433
  %v435 = vpop.f32.mrf.mxu0
  %v436 = vadd.f32 %v352, %v435
  %v437 = vand.u32 %v138, 4294901760
  %v438 = vsub.f32 %v138, %v437
  %439 = vmatmul.f32.gmra.mxu0 %v438
  %v440 = vpop.f32.mrf.mxu0
  %v441 = vadd.f32 %v356, %v440
  %v442 = vand.u32 %v141, 4294901760
  %v443 = vsub.f32 %v141, %v442
  %444 = vmatmul.f32.gmra.mxu0 %v443
  %v445 = vpop.f32.mrf.mxu0
  %v446 = vadd.f32 %v360, %v445
  %v447 = vand.u32 %v144, 4294901760
  %v448 = vsub.f32 %v144, %v447
  %449 = vmatmul.f32.gmra.mxu0 %v448
  %v450 = vpop.f32.mrf.mxu0
  %v451 = vadd.f32 %v364, %v450
  %v452 = vand.u32 %v147, 4294901760
  %v453 = vsub.f32 %v147, %v452
  %454 = vmatmul.f32.gmra.mxu0 %v453
  %v455 = vpop.f32.mrf.mxu0
  %v456 = vadd.f32 %v368, %v455
  %v457 = vand.u32 %v150, 4294901760
  %v458 = vsub.f32 %v150, %v457
  %459 = vmatmul.f32.gmra.mxu0 %v458
  %v460 = vpop.f32.mrf.mxu0
  %v461 = vadd.f32 %v372, %v460
  %v462 = vand.u32 %v153, 4294901760
  %v463 = vsub.f32 %v153, %v462
  %464 = vmatmul.f32.gmra.mxu0 %v463
  %v465 = vpop.f32.mrf.mxu0
  %v466 = vadd.f32 %v376, %v465
  %v467 = vand.u32 %v156, 4294901760
  %v468 = vsub.f32 %v156, %v467
  %469 = vmatmul.f32.gmra.mxu0 %v468
  %v470 = vpop.f32.mrf.mxu0
  %v471 = vadd.f32 %v380, %v470
  %v472 = vand.u32 %v159, 4294901760
  %v473 = vsub.f32 %v159, %v472
  %474 = vmatmul.f32.gmra.mxu0 %v473
  %v475 = vpop.f32.mrf.mxu0
  %v476 = vadd.f32 %v384, %v475
  %v477 = vand.u32 %v162, 4294901760
  %v478 = vsub.f32 %v162, %v477
  %479 = vmatmul.f32.gmra.mxu0 %v478
  %v480 = vpop.f32.mrf.mxu0
  %v481 = vadd.f32 %v388, %v480
  %v482 = vand.u32 %v165, 4294901760
  %v483 = vsub.f32 %v165, %v482
  %484 = vmatmul.f32.gmra.mxu0 %v483
  %v485 = vpop.f32.mrf.mxu0
  %v486 = vadd.f32 %v392, %v485
  %v487 = vand.u32 %v168, 4294901760
  %v488 = vsub.f32 %v168, %v487
  %489 = vmatmul.f32.gmra.mxu0 %v488
  %v490 = vpop.f32.mrf.mxu0
  %v491 = vadd.f32 %v396, %v490
  %v492 = vand.u32 %v171, 4294901760
  %v493 = vsub.f32 %v171, %v492
  %494 = vmatmul.f32.gmra.mxu0 %v493
  %v495 = vpop.f32.mrf.mxu0
  %v496 = vadd.f32 %v400, %v495
  %v497 = vand.u32 %v174, 4294901760
  %v498 = vsub.f32 %v174, %v497
  %499 = vmatmul.f32.gmra.mxu0 %v498
  %v500 = vpop.f32.mrf.mxu0
  %v501 = vadd.f32 %v404, %v500
  %v502 = vand.u32 %v177, 4294901760
  %v503 = vsub.f32 %v177, %v502
  %504 = vmatmul.f32.gmra.mxu0 %v503
  %v505 = vpop.f32.mrf.mxu0
  %v506 = vadd.f32 %v408, %v505
  %v507 = vand.u32 %v180, 4294901760
  %v508 = vsub.f32 %v180, %v507
  %509 = vmatmul.f32.gmra.mxu0 %v508
  %v510 = vpop.f32.mrf.mxu0
  %v511 = vadd.f32 %v412, %v510
  %512 = vdwg.mxu0
  %513 = vmatpush.msra.mxu0 0.0
  %514 = vmatpush.msra.mxu0 0.0
  %515 = vmatpush.msra.mxu0 0.0
  %516 = vmatpush.msra.mxu0 0.0
  %517 = vmatpush.msra.mxu0 0.0
  %518 = vmatpush.msra.mxu0 0.0
  %519 = vmatpush.msra.mxu0 0.0
  %520 = vmatpush.msra.mxu0 0.0
  %521 = vmatpush.msra.mxu0 0.0
  %522 = vmatpush.msra.mxu0 0.0
  %523 = vmatpush.msra.mxu0 0.0
  %524 = vmatpush.msra.mxu0 0.0
  %525 = vmatpush.msra.mxu0 0.0
  %526 = vmatpush.msra.mxu0 0.0
  %527 = vmatpush.msra.mxu0 0.0
  %v528 = vand.u32 %v20, 4294901760
  %529 = vmatpush.msra.mxu0 %v528
  %v530 = vand.u32 %v135, 4294901760
  %v531 = vsub.f32 %v135, %v530
  %v532 = vand.u32 %v531, 4294901760
  %533 = vmatmul.f32.gmra.mxu0 %v532
  %v534 = vpop.f32.mrf.mxu0
  %v535 = vadd.f32 %v436, %v534
  %v536 = vand.u32 %v138, 4294901760
  %v537 = vsub.f32 %v138, %v536
  %v538 = vand.u32 %v537, 4294901760
  %539 = vmatmul.f32.gmra.mxu0 %v538
  %v540 = vpop.f32.mrf.mxu0
  %v541 = vadd.f32 %v441, %v540
  %v542 = vand.u32 %v141, 4294901760
  %v543 = vsub.f32 %v141, %v542
  %v544 = vand.u32 %v543, 4294901760
  %545 = vmatmul.f32.gmra.mxu0 %v544
  %v546 = vpop.f32.mrf.mxu0
  %v547 = vadd.f32 %v446, %v546
  %v548 = vand.u32 %v144, 4294901760
  %v549 = vsub.f32 %v144, %v548
  %v550 = vand.u32 %v549, 4294901760
  %551 = vmatmul.f32.gmra.mxu0 %v550
  %v552 = vpop.f32.mrf.mxu0
  %v553 = vadd.f32 %v451, %v552
  %v554 = vand.u32 %v147, 4294901760
  %v555 = vsub.f32 %v147, %v554
  %v556 = vand.u32 %v555, 4294901760
  %557 = vmatmul.f32.gmra.mxu0 %v556
  %v558 = vpop.f32.mrf.mxu0
  %v559 = vadd.f32 %v456, %v558
  %v560 = vand.u32 %v150, 4294901760
  %v561 = vsub.f32 %v150, %v560
  %v562 = vand.u32 %v561, 4294901760
  %563 = vmatmul.f32.gmra.mxu0 %v562
  %v564 = vpop.f32.mrf.mxu0
  %v565 = vadd.f32 %v461, %v564
  %v566 = vand.u32 %v153, 4294901760
  %v567 = vsub.f32 %v153, %v566
  %v568 = vand.u32 %v567, 4294901760
  %569 = vmatmul.f32.gmra.mxu0 %v568
  %v570 = vpop.f32.mrf.mxu0
  %v571 = vadd.f32 %v466, %v570
  %v572 = vand.u32 %v156, 4294901760
  %v573 = vsub.f32 %v156, %v572
  %v574 = vand.u32 %v573, 4294901760
  %575 = vmatmul.f32.gmra.mxu0 %v574
  %v576 = vpop.f32.mrf.mxu0
  %v577 = vadd.f32 %v471, %v576
  %v578 = vand.u32 %v159, 4294901760
  %v579 = vsub.f32 %v159, %v578
  %v580 = vand.u32 %v579, 4294901760
  %581 = vmatmul.f32.gmra.mxu0 %v580
  %v582 = vpop.f32.mrf.mxu0
  %v583 = vadd.f32 %v476, %v582
  %v584 = vand.u32 %v162, 4294901760
  %v585 = vsub.f32 %v162, %v584
  %v586 = vand.u32 %v585, 4294901760
  %587 = vmatmul.f32.gmra.mxu0 %v586
  %v588 = vpop.f32.mrf.mxu0
  %v589 = vadd.f32 %v481, %v588
  %v590 = vand.u32 %v165, 4294901760
  %v591 = vsub.f32 %v165, %v590
  %v592 = vand.u32 %v591, 4294901760
  %593 = vmatmul.f32.gmra.mxu0 %v592
  %v594 = vpop.f32.mrf.mxu0
  %v595 = vadd.f32 %v486, %v594
  %v596 = vand.u32 %v168, 4294901760
  %v597 = vsub.f32 %v168, %v596
  %v598 = vand.u32 %v597, 4294901760
  %599 = vmatmul.f32.gmra.mxu0 %v598
  %v600 = vpop.f32.mrf.mxu0
  %v601 = vadd.f32 %v491, %v600
  %v602 = vand.u32 %v171, 4294901760
  %v603 = vsub.f32 %v171, %v602
  %v604 = vand.u32 %v603, 4294901760
  %605 = vmatmul.f32.gmra.mxu0 %v604
  %v606 = vpop.f32.mrf.mxu0
  %v607 = vadd.f32 %v496, %v606
  %v608 = vand.u32 %v174, 4294901760
  %v609 = vsub.f32 %v174, %v608
  %v610 = vand.u32 %v609, 4294901760
  %611 = vmatmul.f32.gmra.mxu0 %v610
  %v612 = vpop.f32.mrf.mxu0
  %v613 = vadd.f32 %v501, %v612
  %v614 = vand.u32 %v177, 4294901760
  %v615 = vsub.f32 %v177, %v614
  %v616 = vand.u32 %v615, 4294901760
  %617 = vmatmul.f32.gmra.mxu0 %v616
  %v618 = vpop.f32.mrf.mxu0
  %v619 = vadd.f32 %v506, %v618
  %v620 = vand.u32 %v180, 4294901760
  %v621 = vsub.f32 %v180, %v620
  %v622 = vand.u32 %v621, 4294901760
  %623 = vmatmul.f32.gmra.mxu0 %v622
  %v624 = vpop.f32.mrf.mxu0
  %v625 = vadd.f32 %v511, %v624
  %626 = vdwg.mxu0
  %627 = vmatpush.msra.mxu0 0.0
  %628 = vmatpush.msra.mxu0 0.0
  %629 = vmatpush.msra.mxu0 0.0
  %630 = vmatpush.msra.mxu0 0.0
  %631 = vmatpush.msra.mxu0 0.0
  %632 = vmatpush.msra.mxu0 0.0
  %633 = vmatpush.msra.mxu0 0.0
  %634 = vmatpush.msra.mxu0 0.0
  %635 = vmatpush.msra.mxu0 0.0
  %636 = vmatpush.msra.mxu0 0.0
  %637 = vmatpush.msra.mxu0 0.0
  %638 = vmatpush.msra.mxu0 0.0
  %639 = vmatpush.msra.mxu0 0.0
  %640 = vmatpush.msra.mxu0 0.0
  %641 = vmatpush.msra.mxu0 0.0
  %v642 = vand.u32 %v20, 4294901760
  %v643 = vsub.f32 %v20, %v642
  %v644 = vand.u32 %v643, 4294901760
  %645 = vmatpush.msra.mxu0 %v644
  %v646 = vand.u32 %v135, 4294901760
  %647 = vmatmul.f32.gmra.mxu0 %v646
  %v648 = vpop.f32.mrf.mxu0
  %v649 = vadd.f32 %v535, %v648
  %v650 = vand.u32 %v138, 4294901760
  %651 = vmatmul.f32.gmra.mxu0 %v650
  %v652 = vpop.f32.mrf.mxu0
  %v653 = vadd.f32 %v541, %v652
  %v654 = vand.u32 %v141, 4294901760
  %655 = vmatmul.f32.gmra.mxu0 %v654
  %v656 = vpop.f32.mrf.mxu0
  %v657 = vadd.f32 %v547, %v656
  %v658 = vand.u32 %v144, 4294901760
  %659 = vmatmul.f32.gmra.mxu0 %v658
  %v660 = vpop.f32.mrf.mxu0
  %v661 = vadd.f32 %v553, %v660
  %v662 = vand.u32 %v147, 4294901760
  %663 = vmatmul.f32.gmra.mxu0 %v662
  %v664 = vpop.f32.mrf.mxu0
  %v665 = vadd.f32 %v559, %v664
  %v666 = vand.u32 %v150, 4294901760
  %667 = vmatmul.f32.gmra.mxu0 %v666
  %v668 = vpop.f32.mrf.mxu0
  %v669 = vadd.f32 %v565, %v668
  %v670 = vand.u32 %v153, 4294901760
  %671 = vmatmul.f32.gmra.mxu0 %v670
  %v672 = vpop.f32.mrf.mxu0
  %v673 = vadd.f32 %v571, %v672
  %v674 = vand.u32 %v156, 4294901760
  %675 = vmatmul.f32.gmra.mxu0 %v674
  %v676 = vpop.f32.mrf.mxu0
  %v677 = vadd.f32 %v577, %v676
  %v678 = vand.u32 %v159, 4294901760
  %679 = vmatmul.f32.gmra.mxu0 %v678
  %v680 = vpop.f32.mrf.mxu0
  %v681 = vadd.f32 %v583, %v680
  %v682 = vand.u32 %v162, 4294901760
  %683 = vmatmul.f32.gmra.mxu0 %v682
  %v684 = vpop.f32.mrf.mxu0
  %v685 = vadd.f32 %v589, %v684
  %v686 = vand.u32 %v165, 4294901760
  %687 = vmatmul.f32.gmra.mxu0 %v686
  %v688 = vpop.f32.mrf.mxu0
  %v689 = vadd.f32 %v595, %v688
  %v690 = vand.u32 %v168, 4294901760
  %691 = vmatmul.f32.gmra.mxu0 %v690
  %v692 = vpop.f32.mrf.mxu0
  %v693 = vadd.f32 %v601, %v692
  %v694 = vand.u32 %v171, 4294901760
  %695 = vmatmul.f32.gmra.mxu0 %v694
  %v696 = vpop.f32.mrf.mxu0
  %v697 = vadd.f32 %v607, %v696
  %v698 = vand.u32 %v174, 4294901760
  %699 = vmatmul.f32.gmra.mxu0 %v698
  %v700 = vpop.f32.mrf.mxu0
  %v701 = vadd.f32 %v613, %v700
  %v702 = vand.u32 %v177, 4294901760
  %703 = vmatmul.f32.gmra.mxu0 %v702
  %v704 = vpop.f32.mrf.mxu0
  %v705 = vadd.f32 %v619, %v704
  %v706 = vand.u32 %v180, 4294901760
  %707 = vmatmul.f32.gmra.mxu0 %v706
  %v708 = vpop.f32.mrf.mxu0
  %v709 = vadd.f32 %v625, %v708
  %710 = vdwg.mxu0
  %711 = vmatpush.msra.mxu0 0.0
  %712 = vmatpush.msra.mxu0 0.0
  %713 = vmatpush.msra.mxu0 0.0
  %714 = vmatpush.msra.mxu0 0.0
  %715 = vmatpush.msra.mxu0 0.0
  %716 = vmatpush.msra.mxu0 0.0
  %717 = vmatpush.msra.mxu0 0.0
  %718 = vmatpush.msra.mxu0 0.0
  %719 = vmatpush.msra.mxu0 0.0
  %720 = vmatpush.msra.mxu0 0.0
  %721 = vmatpush.msra.mxu0 0.0
  %722 = vmatpush.msra.mxu0 0.0
  %723 = vmatpush.msra.mxu0 0.0
  %724 = vmatpush.msra.mxu0 0.0
  %725 = vmatpush.msra.mxu0 0.0
  %v726 = vand.u32 %v20, 4294901760
  %727 = vmatpush.msra.mxu0 %v726
  %v728 = vand.u32 %v135, 4294901760
  %729 = vmatmul.f32.gmra.mxu0 %v728
  %v730 = vpop.f32.mrf.mxu0
  %v731 = vadd.f32 %v649, %v730
  %v732 = vand.u32 %v138, 4294901760
  %733 = vmatmul.f32.gmra.mxu0 %v732
  %v734 = vpop.f32.mrf.mxu0
  %v735 = vadd.f32 %v653, %v734
  %v736 = vand.u32 %v141, 4294901760
  %737 = vmatmul.f32.gmra.mxu0 %v736
  %v738 = vpop.f32.mrf.mxu0
  %v739 = vadd.f32 %v657, %v738
  %v740 = vand.u32 %v144, 4294901760
  %741 = vmatmul.f32.gmra.mxu0 %v740
  %v742 = vpop.f32.mrf.mxu0
  %v743 = vadd.f32 %v661, %v742
  %v744 = vand.u32 %v147, 4294901760
  %745 = vmatmul.f32.gmra.mxu0 %v744
  %v746 = vpop.f32.mrf.mxu0
  %v747 = vadd.f32 %v665, %v746
  %v748 = vand.u32 %v150, 4294901760
  %749 = vmatmul.f32.gmra.mxu0 %v748
  %v750 = vpop.f32.mrf.mxu0
  %v751 = vadd.f32 %v669, %v750
  %v752 = vand.u32 %v153, 4294901760
  %753 = vmatmul.f32.gmra.mxu0 %v752
  %v754 = vpop.f32.mrf.mxu0
  %v755 = vadd.f32 %v673, %v754
  %v756 = vand.u32 %v156, 4294901760
  %757 = vmatmul.f32.gmra.mxu0 %v756
  %v758 = vpop.f32.mrf.mxu0
  %v759 = vadd.f32 %v677, %v758
  %v760 = vand.u32 %v159, 4294901760
  %761 = vmatmul.f32.gmra.mxu0 %v760
  %v762 = vpop.f32.mrf.mxu0
  %v763 = vadd.f32 %v681, %v762
  %v764 = vand.u32 %v162, 4294901760
  %765 = vmatmul.f32.gmra.mxu0 %v764
  %v766 = vpop.f32.mrf.mxu0
  %v767 = vadd.f32 %v685, %v766
  %v768 = vand.u32 %v165, 4294901760
  %769 = vmatmul.f32.gmra.mxu0 %v768
  %v770 = vpop.f32.mrf.mxu0
  %v771 = vadd.f32 %v689, %v770
  %v772 = vand.u32 %v168, 4294901760
  %773 = vmatmul.f32.gmra.mxu0 %v772
  %v774 = vpop.f32.mrf.mxu0
  %v775 = vadd.f32 %v693, %v774
  %v776 = vand.u32 %v171, 4294901760
  %777 = vmatmul.f32.gmra.mxu0 %v776
  %v778 = vpop.f32.mrf.mxu0
  %v779 = vadd.f32 %v697, %v778
  %v780 = vand.u32 %v174, 4294901760
  %781 = vmatmul.f32.gmra.mxu0 %v780
  %v782 = vpop.f32.mrf.mxu0
  %v783 = vadd.f32 %v701, %v782
  %v784 = vand.u32 %v177, 4294901760
  %785 = vmatmul.f32.gmra.mxu0 %v784
  %v786 = vpop.f32.mrf.mxu0
  %v787 = vadd.f32 %v705, %v786
  %v788 = vand.u32 %v180, 4294901760
  %789 = vmatmul.f32.gmra.mxu0 %v788
  %v790 = vpop.f32.mrf.mxu0
  %v791 = vadd.f32 %v709, %v790
  %792 = vdwg.mxu0
  %v793 = vmax.f32 %v731, 0.0
  %v794 = vmax.f32 %v735, 0.0
  %v795 = vmax.f32 %v739, 0.0
  %v796 = vmax.f32 %v743, 0.0
  %v797 = vmax.f32 %v747, 0.0
  %v798 = vmax.f32 %v751, 0.0
  %v799 = vmax.f32 %v755, 0.0
  %v800 = vmax.f32 %v759, 0.0
  %v801 = vmax.f32 %v763, 0.0
  %v802 = vmax.f32 %v767, 0.0
  %v803 = vmax.f32 %v771, 0.0
  %v804 = vmax.f32 %v775, 0.0
  %v805 = vmax.f32 %v779, 0.0
  %v806 = vmax.f32 %v783, 0.0
  %v807 = vmax.f32 %v787, 0.0
  %v808 = vmax.f32 %v791, 0.0
  %v809 = vld [vmem:[%s3] sm:$0xf]
  %v810 = vld [vmem:[%s4] sm:$0xf]
  %812 = vset.pattern.permute.xlu0 0
  %813 = vperm.xlu0 %812, %v810
  %v814 = vpop.permute.xlu0 %813
  %v816 = vand.u32 %v808, 4294901760
  %817 = vmatpush.msra.mxu0 %v816
  %v818 = vand.u32 %v807, 4294901760
  %819 = vmatpush.msra.mxu0 %v818
  %v820 = vand.u32 %v806, 4294901760
  %821 = vmatpush.msra.mxu0 %v820
  %v822 = vand.u32 %v805, 4294901760
  %823 = vmatpush.msra.mxu0 %v822
  %v824 = vand.u32 %v804, 4294901760
  %825 = vmatpush.msra.mxu0 %v824
  %v826 = vand.u32 %v803, 4294901760
  %827 = vmatpush.msra.mxu0 %v826
  %v828 = vand.u32 %v802, 4294901760
  %829 = vmatpush.msra.mxu0 %v828
  %v830 = vand.u32 %v801, 4294901760
  %831 = vmatpush.msra.mxu0 %v830
  %v832 = vand.u32 %v800, 4294901760
  %833 = vmatpush.msra.mxu0 %v832
  %v834 = vand.u32 %v799, 4294901760
  %835 = vmatpush.msra.mxu0 %v834
  %v836 = vand.u32 %v798, 4294901760
  %837 = vmatpush.msra.mxu0 %v836
  %v838 = vand.u32 %v797, 4294901760
  %839 = vmatpush.msra.mxu0 %v838
  %v840 = vand.u32 %v796, 4294901760
  %841 = vmatpush.msra.mxu0 %v840
  %v842 = vand.u32 %v795, 4294901760
  %843 = vmatpush.msra.mxu0 %v842
  %v844 = vand.u32 %v794, 4294901760
  %845 = vmatpush.msra.mxu0 %v844
  %v846 = vand.u32 %v793, 4294901760
  %847 = vmatpush.msra.mxu0 %v846
  %v848 = vand.u32 %v809, 4294901760
  %v849 = vsub.f32 %v809, %v848
  %v850 = vand.u32 %v849, 4294901760
  %v851 = vsub.f32 %v849, %v850
  %v852 = vand.u32 %v851, 4294901760
  %853 = vmatmul.f32.gmra.mxu0 %v852
  %v854 = vpop.f32.mrf.mxu0
  %v855 = vadd.f32 %v814, %v854
  %856 = vdwg.mxu0
  %v857 = vand.u32 %v808, 4294901760
  %v858 = vsub.f32 %v808, %v857
  %v859 = vand.u32 %v858, 4294901760
  %v860 = vsub.f32 %v858, %v859
  %v861 = vand.u32 %v860, 4294901760
  %862 = vmatpush.msra.mxu0 %v861
  %v863 = vand.u32 %v807, 4294901760
  %v864 = vsub.f32 %v807, %v863
  %v865 = vand.u32 %v864, 4294901760
  %v866 = vsub.f32 %v864, %v865
  %v867 = vand.u32 %v866, 4294901760
  %868 = vmatpush.msra.mxu0 %v867
  %v869 = vand.u32 %v806, 4294901760
  %v870 = vsub.f32 %v806, %v869
  %v871 = vand.u32 %v870, 4294901760
  %v872 = vsub.f32 %v870, %v871
  %v873 = vand.u32 %v872, 4294901760
  %874 = vmatpush.msra.mxu0 %v873
  %v875 = vand.u32 %v805, 4294901760
  %v876 = vsub.f32 %v805, %v875
  %v877 = vand.u32 %v876, 4294901760
  %v878 = vsub.f32 %v876, %v877
  %v879 = vand.u32 %v878, 4294901760
  %880 = vmatpush.msra.mxu0 %v879
  %v881 = vand.u32 %v804, 4294901760
  %v882 = vsub.f32 %v804, %v881
  %v883 = vand.u32 %v882, 4294901760
  %v884 = vsub.f32 %v882, %v883
  %v885 = vand.u32 %v884, 4294901760
  %886 = vmatpush.msra.mxu0 %v885
  %v887 = vand.u32 %v803, 4294901760
  %v888 = vsub.f32 %v803, %v887
  %v889 = vand.u32 %v888, 4294901760
  %v890 = vsub.f32 %v888, %v889
  %v891 = vand.u32 %v890, 4294901760
  %892 = vmatpush.msra.mxu0 %v891
  %v893 = vand.u32 %v802, 4294901760
  %v894 = vsub.f32 %v802, %v893
  %v895 = vand.u32 %v894, 4294901760
  %v896 = vsub.f32 %v894, %v895
  %v897 = vand.u32 %v896, 4294901760
  %898 = vmatpush.msra.mxu0 %v897
  %v899 = vand.u32 %v801, 4294901760
  %v900 = vsub.f32 %v801, %v899
  %v901 = vand.u32 %v900, 4294901760
  %v902 = vsub.f32 %v900, %v901
  %v903 = vand.u32 %v902, 4294901760
  %904 = vmatpush.msra.mxu0 %v903
  %v905 = vand.u32 %v800, 4294901760
  %v906 = vsub.f32 %v800, %v905
  %v907 = vand.u32 %v906, 4294901760
  %v908 = vsub.f32 %v906, %v907
  %v909 = vand.u32 %v908, 4294901760
  %910 = vmatpush.msra.mxu0 %v909
  %v911 = vand.u32 %v799, 4294901760
  %v912 = vsub.f32 %v799, %v911
  %v913 = vand.u32 %v912, 4294901760
  %v914 = vsub.f32 %v912, %v913
  %v915 = vand.u32 %v914, 4294901760
  %916 = vmatpush.msra.mxu0 %v915
  %v917 = vand.u32 %v798, 4294901760
  %v918 = vsub.f32 %v798, %v917
  %v919 = vand.u32 %v918, 4294901760
  %v920 = vsub.f32 %v918, %v919
  %v921 = vand.u32 %v920, 4294901760
  %922 = vmatpush.msra.mxu0 %v921
  %v923 = vand.u32 %v797, 4294901760
  %v924 = vsub.f32 %v797, %v923
  %v925 = vand.u32 %v924, 4294901760
  %v926 = vsub.f32 %v924, %v925
  %v927 = vand.u32 %v926, 4294901760
  %928 = vmatpush.msra.mxu0 %v927
  %v929 = vand.u32 %v796, 4294901760
  %v930 = vsub.f32 %v796, %v929
  %v931 = vand.u32 %v930, 4294901760
  %v932 = vsub.f32 %v930, %v931
  %v933 = vand.u32 %v932, 4294901760
  %934 = vmatpush.msra.mxu0 %v933
  %v935 = vand.u32 %v795, 4294901760
  %v936 = vsub.f32 %v795, %v935
  %v937 = vand.u32 %v936, 4294901760
  %v938 = vsub.f32 %v936, %v937
  %v939 = vand.u32 %v938, 4294901760
  %940 = vmatpush.msra.mxu0 %v939
  %v941 = vand.u32 %v794, 4294901760
  %v942 = vsub.f32 %v794, %v941
  %v943 = vand.u32 %v942, 4294901760
  %v944 = vsub.f32 %v942, %v943
  %v945 = vand.u32 %v944, 4294901760
  %946 = vmatpush.msra.mxu0 %v945
  %v947 = vand.u32 %v793, 4294901760
  %v948 = vsub.f32 %v793, %v947
  %v949 = vand.u32 %v948, 4294901760
  %v950 = vsub.f32 %v948, %v949
  %v951 = vand.u32 %v950, 4294901760
  %952 = vmatpush.msra.mxu0 %v951
  %v953 = vand.u32 %v809, 4294901760
  %954 = vmatmul.f32.gmra.mxu0 %v953
  %v955 = vpop.f32.mrf.mxu0
  %v956 = vadd.f32 %v855, %v955
  %957 = vdwg.mxu0
  %v958 = vand.u32 %v808, 4294901760
  %v959 = vsub.f32 %v808, %v958
  %960 = vmatpush.msra.mxu0 %v959
  %v961 = vand.u32 %v807, 4294901760
  %v962 = vsub.f32 %v807, %v961
  %963 = vmatpush.msra.mxu0 %v962
  %v964 = vand.u32 %v806, 4294901760
  %v965 = vsub.f32 %v806, %v964
  %966 = vmatpush.msra.mxu0 %v965
  %v967 = vand.u32 %v805, 4294901760
  %v968 = vsub.f32 %v805, %v967
  %969 = vmatpush.msra.mxu0 %v968
  %v970 = vand.u32 %v804, 4294901760
  %v971 = vsub.f32 %v804, %v970
  %972 = vmatpush.msra.mxu0 %v971
  %v973 = vand.u32 %v803, 4294901760
  %v974 = vsub.f32 %v803, %v973
  %975 = vmatpush.msra.mxu0 %v974
  %v976 = vand.u32 %v802, 4294901760
  %v977 = vsub.f32 %v802, %v976
  %978 = vmatpush.msra.mxu0 %v977
  %v979 = vand.u32 %v801, 4294901760
  %v980 = vsub.f32 %v801, %v979
  %981 = vmatpush.msra.mxu0 %v980
  %v982 = vand.u32 %v800, 4294901760
  %v983 = vsub.f32 %v800, %v982
  %984 = vmatpush.msra.mxu0 %v983
  %v985 = vand.u32 %v799, 4294901760
  %v986 = vsub.f32 %v799, %v985
  %987 = vmatpush.msra.mxu0 %v986
  %v988 = vand.u32 %v798, 4294901760
  %v989 = vsub.f32 %v798, %v988
  %990 = vmatpush.msra.mxu0 %v989
  %v991 = vand.u32 %v797, 4294901760
  %v992 = vsub.f32 %v797, %v991
  %993 = vmatpush.msra.mxu0 %v992
  %v994 = vand.u32 %v796, 4294901760
  %v995 = vsub.f32 %v796, %v994
  %996 = vmatpush.msra.mxu0 %v995
  %v997 = vand.u32 %v795, 4294901760
  %v998 = vsub.f32 %v795, %v997
  %999 = vmatpush.msra.mxu0 %v998
  %v1000 = vand.u32 %v794, 4294901760
  %v1001 = vsub.f32 %v794, %v1000
  %1002 = vmatpush.msra.mxu0 %v1001
  %v1003 = vand.u32 %v793, 4294901760
  %v1004 = vsub.f32 %v793, %v1003
  %1005 = vmatpush.msra.mxu0 %v1004
  %v1006 = vand.u32 %v809, 4294901760
  %v1007 = vsub.f32 %v809, %v1006
  %1008 = vmatmul.f32.gmra.mxu0 %v1007
  %v1009 = vpop.f32.mrf.mxu0
  %v1010 = vadd.f32 %v956, %v1009
  %1011 = vdwg.mxu0
  %v1012 = vand.u32 %v808, 4294901760
  %1013 = vmatpush.msra.mxu0 %v1012
  %v1014 = vand.u32 %v807, 4294901760
  %1015 = vmatpush.msra.mxu0 %v1014
  %v1016 = vand.u32 %v806, 4294901760
  %1017 = vmatpush.msra.mxu0 %v1016
  %v1018 = vand.u32 %v805, 4294901760
  %1019 = vmatpush.msra.mxu0 %v1018
  %v1020 = vand.u32 %v804, 4294901760
  %1021 = vmatpush.msra.mxu0 %v1020
  %v1022 = vand.u32 %v803, 4294901760
  %1023 = vmatpush.msra.mxu0 %v1022
  %v1024 = vand.u32 %v802, 4294901760
  %1025 = vmatpush.msra.mxu0 %v1024
  %v1026 = vand.u32 %v801, 4294901760
  %1027 = vmatpush.msra.mxu0 %v1026
  %v1028 = vand.u32 %v800, 4294901760
  %1029 = vmatpush.msra.mxu0 %v1028
  %v1030 = vand.u32 %v799, 4294901760
  %1031 = vmatpush.msra.mxu0 %v1030
  %v1032 = vand.u32 %v798, 4294901760
  %1033 = vmatpush.msra.mxu0 %v1032
  %v1034 = vand.u32 %v797, 4294901760
  %1035 = vmatpush.msra.mxu0 %v1034
  %v1036 = vand.u32 %v796, 4294901760
  %1037 = vmatpush.msra.mxu0 %v1036
  %v1038 = vand.u32 %v795, 4294901760
  %1039 = vmatpush.msra.mxu0 %v1038
  %v1040 = vand.u32 %v794, 4294901760
  %1041 = vmatpush.msra.mxu0 %v1040
  %v1042 = vand.u32 %v793, 4294901760
  %1043 = vmatpush.msra.mxu0 %v1042
  %v1044 = vand.u32 %v809, 4294901760
  %v1045 = vsub.f32 %v809, %v1044
  %v1046 = vand.u32 %v1045, 4294901760
  %1047 = vmatmul.f32.gmra.mxu0 %v1046
  %v1048 = vpop.f32.mrf.mxu0
  %v1049 = vadd.f32 %v1010, %v1048
  %1050 = vdwg.mxu0
  %v1051 = vand.u32 %v808, 4294901760
  %v1052 = vsub.f32 %v808, %v1051
  %v1053 = vand.u32 %v1052, 4294901760
  %1054 = vmatpush.msra.mxu0 %v1053
  %v1055 = vand.u32 %v807, 4294901760
  %v1056 = vsub.f32 %v807, %v1055
  %v1057 = vand.u32 %v1056, 4294901760
  %1058 = vmatpush.msra.mxu0 %v1057
  %v1059 = vand.u32 %v806, 4294901760
  %v1060 = vsub.f32 %v806, %v1059
  %v1061 = vand.u32 %v1060, 4294901760
  %1062 = vmatpush.msra.mxu0 %v1061
  %v1063 = vand.u32 %v805, 4294901760
  %v1064 = vsub.f32 %v805, %v1063
  %v1065 = vand.u32 %v1064, 4294901760
  %1066 = vmatpush.msra.mxu0 %v1065
  %v1067 = vand.u32 %v804, 4294901760
  %v1068 = vsub.f32 %v804, %v1067
  %v1069 = vand.u32 %v1068, 4294901760
  %1070 = vmatpush.msra.mxu0 %v1069
  %v1071 = vand.u32 %v803, 4294901760
  %v1072 = vsub.f32 %v803, %v1071
  %v1073 = vand.u32 %v1072, 4294901760
  %1074 = vmatpush.msra.mxu0 %v1073
  %v1075 = vand.u32 %v802, 4294901760
  %v1076 = vsub.f32 %v802, %v1075
  %v1077 = vand.u32 %v1076, 4294901760
  %1078 = vmatpush.msra.mxu0 %v1077
  %v1079 = vand.u32 %v801, 4294901760
  %v1080 = vsub.f32 %v801, %v1079
  %v1081 = vand.u32 %v1080, 4294901760
  %1082 = vmatpush.msra.mxu0 %v1081
  %v1083 = vand.u32 %v800, 4294901760
  %v1084 = vsub.f32 %v800, %v1083
  %v1085 = vand.u32 %v1084, 4294901760
  %1086 = vmatpush.msra.mxu0 %v1085
  %v1087 = vand.u32 %v799, 4294901760
  %v1088 = vsub.f32 %v799, %v1087
  %v1089 = vand.u32 %v1088, 4294901760
  %1090 = vmatpush.msra.mxu0 %v1089
  %v1091 = vand.u32 %v798, 4294901760
  %v1092 = vsub.f32 %v798, %v1091
  %v1093 = vand.u32 %v1092, 4294901760
  %1094 = vmatpush.msra.mxu0 %v1093
  %v1095 = vand.u32 %v797, 4294901760
  %v1096 = vsub.f32 %v797, %v1095
  %v1097 = vand.u32 %v1096, 4294901760
  %1098 = vmatpush.msra.mxu0 %v1097
  %v1099 = vand.u32 %v796, 4294901760
  %v1100 = vsub.f32 %v796, %v1099
  %v1101 = vand.u32 %v1100, 4294901760
  %1102 = vmatpush.msra.mxu0 %v1101
  %v1103 = vand.u32 %v795, 4294901760
  %v1104 = vsub.f32 %v795, %v1103
  %v1105 = vand.u32 %v1104, 4294901760
  %1106 = vmatpush.msra.mxu0 %v1105
  %v1107 = vand.u32 %v794, 4294901760
  %v1108 = vsub.f32 %v794, %v1107
  %v1109 = vand.u32 %v1108, 4294901760
  %1110 = vmatpush.msra.mxu0 %v1109
  %v1111 = vand.u32 %v793, 4294901760
  %v1112 = vsub.f32 %v793, %v1111
  %v1113 = vand.u32 %v1112, 4294901760
  %1114 = vmatpush.msra.mxu0 %v1113
  %v1115 = vand.u32 %v809, 4294901760
  %1116 = vmatmul.f32.gmra.mxu0 %v1115
  %v1117 = vpop.f32.mrf.mxu0
  %v1118 = vadd.f32 %v1049, %v1117
  %1119 = vdwg.mxu0
  %v1120 = vand.u32 %v808, 4294901760
  %1121 = vmatpush.msra.mxu0 %v1120
  %v1122 = vand.u32 %v807, 4294901760
  %1123 = vmatpush.msra.mxu0 %v1122
  %v1124 = vand.u32 %v806, 4294901760
  %1125 = vmatpush.msra.mxu0 %v1124
  %v1126 = vand.u32 %v805, 4294901760
  %1127 = vmatpush.msra.mxu0 %v1126
  %v1128 = vand.u32 %v804, 4294901760
  %1129 = vmatpush.msra.mxu0 %v1128
  %v1130 = vand.u32 %v803, 4294901760
  %1131 = vmatpush.msra.mxu0 %v1130
  %v1132 = vand.u32 %v802, 4294901760
  %1133 = vmatpush.msra.mxu0 %v1132
  %v1134 = vand.u32 %v801, 4294901760
  %1135 = vmatpush.msra.mxu0 %v1134
  %v1136 = vand.u32 %v800, 4294901760
  %1137 = vmatpush.msra.mxu0 %v1136
  %v1138 = vand.u32 %v799, 4294901760
  %1139 = vmatpush.msra.mxu0 %v1138
  %v1140 = vand.u32 %v798, 4294901760
  %1141 = vmatpush.msra.mxu0 %v1140
  %v1142 = vand.u32 %v797, 4294901760
  %1143 = vmatpush.msra.mxu0 %v1142
  %v1144 = vand.u32 %v796, 4294901760
  %1145 = vmatpush.msra.mxu0 %v1144
  %v1146 = vand.u32 %v795, 4294901760
  %1147 = vmatpush.msra.mxu0 %v1146
  %v1148 = vand.u32 %v794, 4294901760
  %1149 = vmatpush.msra.mxu0 %v1148
  %v1150 = vand.u32 %v793, 4294901760
  %1151 = vmatpush.msra.mxu0 %v1150
  %v1152 = vand.u32 %v809, 4294901760
  %1153 = vmatmul.f32.gmra.mxu0 %v1152
  %v1154 = vpop.f32.mrf.mxu0
  %v1155 = vadd.f32 %v1118, %v1154
  %1156 = vdwg.mxu0
  %vm1157 = vcmask 1043456
  %v1158 = vsel %vm1157, %v1155, -inf
  %v1159 = vrot.slane %v1158, 4
  %v1160 = vmax.f32 %v1158, %v1159
  %v1161 = vrot.slane %v1160, 2
  %v1162 = vmax.f32 %v1160, %v1161
  %v1163 = vrot.slane %v1162, 1
  %v1164 = vmax.f32 %v1162, %v1163
  %v1165 = vsub.f32 %v1155, %v1164
  %v1166 = vmul.f32 %v1165, 1.442695
  %v1167 = vpow.pop %v1166
  %v1168 = vsel %vm1157, %v1167, 0.0
  %v1169 = vrot.slane %v1168, 4
  %v1170 = vadd.f32 %v1168, %v1169
  %v1171 = vrot.slane %v1170, 2
  %v1172 = vadd.f32 %v1170, %v1171
  %v1173 = vrot.slane %v1172, 1
  %v1174 = vadd.f32 %v1172, %v1173
  %v1175 = vrcp.pop %v1174
  %v1176 = vmul.f32 %v1174, %v1175
  %v1177 = vsub.f32 1.0, %v1176
  %v1178 = vmul.f32 %v1175, %v1177
  %v1179 = vadd.f32 %v1175, %v1178
  %vm1180 = vweird.f32 %v1174
  %vm1181 = vweird.f32 %v1175
  %vm1182 = vmor %vm1180, %vm1181
  %v1183 = vsel %vm1182, %v1175, %v1179
  %v1184 = vand.u32 2147483647, %v1174
  %vm1185 = vcmp.eq.f32.partialorder %v1184, 8.507059e+37
  %v1186 = vand.u32 %v1174, 2147483648
  %v1187 = vor.u32 1.1754944e-38, %v1186
  %v1188 = vsel %vm1185, %v1187, %v1183
  %v1189 = vmul.f32 %v1167, %v1188
  %1190 = vst [vmem:[%s5] sm:$0xf] %v1189
  // Predicated region
  $region22: #{_forward_impl.1} parent=0 // pred_check
    _
  $region23: #{_forward_impl.1} parent=0 // pred_check_branch
    %1192 = sbr.rel (0) target = $region25
  $region24: #{_forward_impl.1} parent=0 // pred_region
    _
  $region25: #{_forward_impl.1} parent=0 // pred_fallthru
    _
  // Predicated region
  $region26: #{_forward_impl.1} parent=0 // pred_check
    _
  $region27: #{_forward_impl.1} parent=0 // pred_check_branch
    %1194 = sbr.rel (0) target = $region29
  $region28: #{_forward_impl.1} parent=0 // pred_region
    _
  $region29: #{_forward_impl.1} parent=0 // pred_fallthru
    _

</llo_original>
